<compile_context>
chip_gen: v5e
topology: v5e:2x2
jax: 0.10.0
libtpu: 0.0.40
codegen_flags: <defaults>
</compile_context>

<pallas_src>
import jax
import jax.numpy as jnp
from jax.experimental import pallas as pl
from jax.experimental.pallas import tpu as pltpu

# ---- configuration -------------------------------------------------------
LATENT_DIM = 32
LABEL_DIM = 10
FC_OUT = (64, 32, 1)          # d_fc_out_features_0, d_fc_out_features_1, final
RELU_SLOPE = 0.2              # config['d_relu_slope'], LeakyReLU
OUT_PAD = 128                 # lane-dense output width (final col 0 is real)
BATCH = 256
TILE_B = 128                  # batch tile; trivially fits VMEM on v5e/v6e/v7x


def _leaky_relu(h):
    return jnp.where(h > 0, h, RELU_SLOPE * h)


def discriminator_kernel(x_ref, y_ref,
                         w0x_ref, w0y_ref, b0_ref,
                         w1_ref, b1_ref,
                         w2_ref, b2_ref,
                         out_ref):
    # layer 0: concat folded into two dots (x @ W0[:32] + y @ W0[32:]) + b0
    h = (jnp.dot(x_ref[...], w0x_ref[...], preferred_element_type=jnp.float32)
         + jnp.dot(y_ref[...], w0y_ref[...], preferred_element_type=jnp.float32)
         + b0_ref[...])
    h = _leaky_relu(h)

    # layer 1: (TB, 64) @ (64, 32) + b1 -> LeakyReLU
    h = jnp.dot(h.astype(jnp.bfloat16), w1_ref[...],
                preferred_element_type=jnp.float32) + b1_ref[...]
    h = _leaky_relu(h)

    # layer 2 (final, padded to 128 lanes): (TB, 32) @ (32, 128) + b2 -> LeakyReLU
    # columns 1..127 of w2/b2 are zero, so they stay 0 after the activation.
    h = jnp.dot(h.astype(jnp.bfloat16), w2_ref[...],
                preferred_element_type=jnp.float32) + b2_ref[...]
    h = _leaky_relu(h)

    out_ref[...] = h.astype(out_ref.dtype)


def discriminator_forward(x, y, params, *, tile_b=TILE_B):
    """x: (B, latent_dim) f32, y: (B, label_dim) f32 -> (B, 1) f32."""
    (w0, b0), (w1, b1), (w2, b2) = params
    B = x.shape[0]
    num_tiles = pl.cdiv(B, tile_b)
    b_pad = num_tiles * tile_b

    # ---- wrapper-side weight prep (one-time, outside the kernel) ----------
    # split W0 (removes the in-kernel lane-axis concat), cast matmul operands
    # to bf16, pad the final layer to 128 output lanes for an unmasked store.
    w0x = w0[:LATENT_DIM].astype(jnp.bfloat16)            # (32, 64)
    w0y = w0[LATENT_DIM:].astype(jnp.bfloat16)            # (10, 64)
    w1b = w1.astype(jnp.bfloat16)                         # (64, 32)
    w2p = (jnp.zeros((w2.shape[0], OUT_PAD), jnp.float32)
           .at[:, :1].set(w2).astype(jnp.bfloat16))       # (32, 128)
    b2p = jnp.zeros((1, OUT_PAD), jnp.float32).at[:, :1].set(b2)   # (1, 128)

    xb = x.astype(jnp.bfloat16)
    yb = y.astype(jnp.bfloat16)
    if b_pad != B:
        xb = jnp.pad(xb, ((0, b_pad - B), (0, 0)))
        yb = jnp.pad(yb, ((0, b_pad - B), (0, 0)))

    def resident(shape):
        # weights/biases: same block every grid step -> stay VMEM-resident.
        return pl.BlockSpec(shape, lambda i: (0, 0))

    out = pl.pallas_call(
        discriminator_kernel,
        out_shape=jax.ShapeDtypeStruct((b_pad, OUT_PAD), jnp.float32),
        grid=(num_tiles,),
        in_specs=[
            pl.BlockSpec((tile_b, LATENT_DIM), lambda i: (i, 0)),   # x tile
            pl.BlockSpec((tile_b, LABEL_DIM), lambda i: (i, 0)),    # y tile
            resident(w0x.shape),
            resident(w0y.shape),
            resident(b0.shape),
            resident(w1b.shape),
            resident(b1.shape),
            resident(w2p.shape),
            resident(b2p.shape),
        ],
        out_specs=pl.BlockSpec((tile_b, OUT_PAD), lambda i: (i, 0)),
        compiler_params=pltpu.CompilerParams(
            dimension_semantics=("parallel",)),
    )(xb, yb, w0x, w0y, b0, w1b, b1, w2p, b2p)

    return out[:B, :1]


def init_params(key):
    """Deterministic synthetic init; PyTorch-Linear-compatible fan-in scaling.
    Master weights are f32, stored as (in, out) = transpose of PyTorch's (out, in)."""
    dims_in = (LATENT_DIM + LABEL_DIM, FC_OUT[0], FC_OUT[1])
    dims_out = FC_OUT
    params = []
    for din, dout in zip(dims_in, dims_out):
        key, kw, kb = jax.random.split(key, 3)
        bound = 1.0 / jnp.sqrt(din)
        w = jax.random.uniform(kw, (din, dout), jnp.float32, -bound, bound)
        b = jax.random.uniform(kb, (1, dout), jnp.float32, -bound, bound)
        params.append((w, b))
    return params


def reference_forward(x, y, params):
    """Pure-JAX f32 reference matching the PyTorch forward."""
    h = jnp.concatenate([x, y], axis=1)
    for w, b in params:
        h = _leaky_relu(h @ w + b)
    return h


if __name__ == "__main__":
    key = jax.random.PRNGKey(0)
    kx, ky, kp = jax.random.split(key, 3)

    x = jax.random.normal(kx, (BATCH, LATENT_DIM), jnp.float32)
    labels = jax.random.randint(ky, (BATCH,), 0, LABEL_DIM)
    y = jax.nn.one_hot(labels, LABEL_DIM, dtype=jnp.float32)

    params = init_params(kp)

    out = discriminator_forward(x, y, params)
    out = jax.block_until_ready(out)

    ref = reference_forward(x, y, params)
    assert out.shape == (BATCH, 1), out.shape
    # bf16 matmul operands vs. pure-f32 reference -> allow ~1% discrepancy.
    assert jnp.allclose(out, ref, atol=3e-2, rtol=3e-2), (
        "Pallas output does not match JAX reference")

    print("KERNEL_OK")
</pallas_src>

<mosaic_0001>
module attributes {stable_mosaic.version = 11 : i64} {
  func.func @discriminator_kernel(%arg0: i32, %arg1: memref<128x32xbf16, #tpu.memory_space<vmem>>, %arg2: memref<128x10xbf16, #tpu.memory_space<vmem>>, %arg3: memref<32x64xbf16, #tpu.memory_space<vmem>>, %arg4: memref<10x64xbf16, #tpu.memory_space<vmem>>, %arg5: memref<1x64xf32, #tpu.memory_space<vmem>>, %arg6: memref<64x32xbf16, #tpu.memory_space<vmem>>, %arg7: memref<1x32xf32, #tpu.memory_space<vmem>>, %arg8: memref<32x128xbf16, #tpu.memory_space<vmem>>, %arg9: memref<1x128xf32, #tpu.memory_space<vmem>>, %arg10: memref<128x128xf32, #tpu.memory_space<vmem>>) attributes {dimension_semantics = [#tpu.dimension_semantics<parallel>], iteration_bounds = array<i64: 2>, scalar_prefetch = 0 : i64, scratch_operands = 0 : i64, tpu.core_type = #tpu.core_type<tc>, window_params = [{transform_indices = @transform_0, window_bounds = array<i64: 128, 32>}, {transform_indices = @transform_1, window_bounds = array<i64: 128, 10>}, {pipeline_mode = #tpu.pipeline_mode<synchronous>, transform_indices = @transform_2, window_bounds = array<i64: 32, 64>}, {pipeline_mode = #tpu.pipeline_mode<synchronous>, transform_indices = @transform_3, window_bounds = array<i64: 10, 64>}, {pipeline_mode = #tpu.pipeline_mode<synchronous>, transform_indices = @transform_4, window_bounds = array<i64: 1, 64>}, {pipeline_mode = #tpu.pipeline_mode<synchronous>, transform_indices = @transform_5, window_bounds = array<i64: 64, 32>}, {pipeline_mode = #tpu.pipeline_mode<synchronous>, transform_indices = @transform_6, window_bounds = array<i64: 1, 32>}, {pipeline_mode = #tpu.pipeline_mode<synchronous>, transform_indices = @transform_7, window_bounds = array<i64: 32, 128>}, {pipeline_mode = #tpu.pipeline_mode<synchronous>, transform_indices = @transform_8, window_bounds = array<i64: 1, 128>}, {transform_indices = @transform_9, window_bounds = array<i64: 128, 128>}]} {
    %c0 = arith.constant 0 : index
    %c0_0 = arith.constant 0 : index
    %0 = vector.load %arg1[%c0, %c0_0] : memref<128x32xbf16, #tpu.memory_space<vmem>>, vector<128x32xbf16>
    %c0_1 = arith.constant 0 : index
    %c0_2 = arith.constant 0 : index
    %1 = vector.load %arg3[%c0_1, %c0_2] : memref<32x64xbf16, #tpu.memory_space<vmem>>, vector<32x64xbf16>
    %cst = arith.constant dense<0.000000e+00> : vector<128x64xf32>
    %2 = tpu.matmul %0, %1, %cst {dimension_numbers = #tpu.dot_dimension_numbers<[1], [0], [0], [1], [0, 0, 1, 1], [], []>} : vector<128x32xbf16>, vector<32x64xbf16>, vector<128x64xf32> -> vector<128x64xf32>
    %c0_3 = arith.constant 0 : index
    %c0_4 = arith.constant 0 : index
    %3 = vector.load %arg2[%c0_3, %c0_4] : memref<128x10xbf16, #tpu.memory_space<vmem>>, vector<128x10xbf16>
    %c0_5 = arith.constant 0 : index
    %c0_6 = arith.constant 0 : index
    %4 = vector.load %arg4[%c0_5, %c0_6] : memref<10x64xbf16, #tpu.memory_space<vmem>>, vector<10x64xbf16>
    %cst_7 = arith.constant dense<0.000000e+00> : vector<128x64xf32>
    %5 = tpu.matmul %3, %4, %cst_7 {dimension_numbers = #tpu.dot_dimension_numbers<[1], [0], [0], [1], [0, 0, 1, 1], [], []>} : vector<128x10xbf16>, vector<10x64xbf16>, vector<128x64xf32> -> vector<128x64xf32>
    %6 = arith.addf %2, %5 : vector<128x64xf32>
    %c0_8 = arith.constant 0 : index
    %c0_9 = arith.constant 0 : index
    %7 = vector.load %arg5[%c0_8, %c0_9] : memref<1x64xf32, #tpu.memory_space<vmem>>, vector<1x64xf32>
    %8 = vector.broadcast %7 : vector<1x64xf32> to vector<128x64xf32>
    %9 = arith.addf %6, %8 : vector<128x64xf32>
    %cst_10 = arith.constant 0.000000e+00 : f32
    %10 = vector.broadcast %cst_10 : f32 to vector<128x64xf32>
    %11 = arith.cmpf ogt, %9, %10 : vector<128x64xf32>
    %cst_11 = arith.constant 2.000000e-01 : f32
    %12 = vector.broadcast %cst_11 : f32 to vector<128x64xf32>
    %13 = arith.mulf %12, %9 : vector<128x64xf32>
    %14 = arith.select %11, %9, %13 : vector<128x64xi1>, vector<128x64xf32>
    %15 = arith.truncf %14 : vector<128x64xf32> to vector<128x64xbf16>
    %c0_12 = arith.constant 0 : index
    %c0_13 = arith.constant 0 : index
    %16 = vector.load %arg6[%c0_12, %c0_13] : memref<64x32xbf16, #tpu.memory_space<vmem>>, vector<64x32xbf16>
    %cst_14 = arith.constant dense<0.000000e+00> : vector<128x32xf32>
    %17 = tpu.matmul %15, %16, %cst_14 {dimension_numbers = #tpu.dot_dimension_numbers<[1], [0], [0], [1], [0, 0, 1, 1], [], []>} : vector<128x64xbf16>, vector<64x32xbf16>, vector<128x32xf32> -> vector<128x32xf32>
    %c0_15 = arith.constant 0 : index
    %c0_16 = arith.constant 0 : index
    %18 = vector.load %arg7[%c0_15, %c0_16] : memref<1x32xf32, #tpu.memory_space<vmem>>, vector<1x32xf32>
    %19 = vector.broadcast %18 : vector<1x32xf32> to vector<128x32xf32>
    %20 = arith.addf %17, %19 : vector<128x32xf32>
    %cst_17 = arith.constant 0.000000e+00 : f32
    %21 = vector.broadcast %cst_17 : f32 to vector<128x32xf32>
    %22 = arith.cmpf ogt, %20, %21 : vector<128x32xf32>
    %cst_18 = arith.constant 2.000000e-01 : f32
    %23 = vector.broadcast %cst_18 : f32 to vector<128x32xf32>
    %24 = arith.mulf %23, %20 : vector<128x32xf32>
    %25 = arith.select %22, %20, %24 : vector<128x32xi1>, vector<128x32xf32>
    %26 = arith.truncf %25 : vector<128x32xf32> to vector<128x32xbf16>
    %c0_19 = arith.constant 0 : index
    %c0_20 = arith.constant 0 : index
    %27 = vector.load %arg8[%c0_19, %c0_20] : memref<32x128xbf16, #tpu.memory_space<vmem>>, vector<32x128xbf16>
    %cst_21 = arith.constant dense<0.000000e+00> : vector<128x128xf32>
    %28 = tpu.matmul %26, %27, %cst_21 {dimension_numbers = #tpu.dot_dimension_numbers<[1], [0], [0], [1], [0, 0, 1, 1], [], []>} : vector<128x32xbf16>, vector<32x128xbf16>, vector<128x128xf32> -> vector<128x128xf32>
    %c0_22 = arith.constant 0 : index
    %c0_23 = arith.constant 0 : index
    %29 = vector.load %arg9[%c0_22, %c0_23] : memref<1x128xf32, #tpu.memory_space<vmem>>, vector<1x128xf32>
    %30 = vector.broadcast %29 : vector<1x128xf32> to vector<128x128xf32>
    %31 = arith.addf %28, %30 : vector<128x128xf32>
    %cst_24 = arith.constant 0.000000e+00 : f32
    %32 = vector.broadcast %cst_24 : f32 to vector<128x128xf32>
    %33 = arith.cmpf ogt, %31, %32 : vector<128x128xf32>
    %cst_25 = arith.constant 2.000000e-01 : f32
    %34 = vector.broadcast %cst_25 : f32 to vector<128x128xf32>
    %35 = arith.mulf %34, %31 : vector<128x128xf32>
    %36 = arith.select %33, %31, %35 : vector<128x128xi1>, vector<128x128xf32>
    %c0_26 = arith.constant 0 : index
    %c0_27 = arith.constant 0 : index
    %37 = vector.load %arg10[%c0_26, %c0_27] : memref<128x128xf32, #tpu.memory_space<vmem>>, vector<128x128xf32>
    tpu.vector_store %arg10[%c0_26, %c0_27], %36 {strides = array<i32>} : memref<128x128xf32, #tpu.memory_space<vmem>>, vector<128x128xf32>,
    return
  }
  func.func @transform_0(%arg0: i32) -> (i32, i32) {
    %c0_i32 = arith.constant 0 : i32
    %c0_i32_0 = arith.constant 0 : i32
    return %arg0, %c0_i32 : i32, i32
  }
  func.func @transform_1(%arg0: i32) -> (i32, i32) {
    %c0_i32 = arith.constant 0 : i32
    %c0_i32_0 = arith.constant 0 : i32
    return %arg0, %c0_i32 : i32, i32
  }
  func.func @transform_2(%arg0: i32) -> (i32, i32) {
    %c0_i32 = arith.constant 0 : i32
    %c0_i32_0 = arith.constant 0 : i32
    %c0_i32_1 = arith.constant 0 : i32
    return %c0_i32, %c0_i32_0 : i32, i32
  }
  func.func @transform_3(%arg0: i32) -> (i32, i32) {
    %c0_i32 = arith.constant 0 : i32
    %c0_i32_0 = arith.constant 0 : i32
    %c0_i32_1 = arith.constant 0 : i32
    return %c0_i32, %c0_i32_0 : i32, i32
  }
  func.func @transform_4(%arg0: i32) -> (i32, i32) {
    %c0_i32 = arith.constant 0 : i32
    %c0_i32_0 = arith.constant 0 : i32
    %c0_i32_1 = arith.constant 0 : i32
    return %c0_i32, %c0_i32_0 : i32, i32
  }
  func.func @transform_5(%arg0: i32) -> (i32, i32) {
    %c0_i32 = arith.constant 0 : i32
    %c0_i32_0 = arith.constant 0 : i32
    %c0_i32_1 = arith.constant 0 : i32
    return %c0_i32, %c0_i32_0 : i32, i32
  }
  func.func @transform_6(%arg0: i32) -> (i32, i32) {
    %c0_i32 = arith.constant 0 : i32
    %c0_i32_0 = arith.constant 0 : i32
    %c0_i32_1 = arith.constant 0 : i32
    return %c0_i32, %c0_i32_0 : i32, i32
  }
  func.func @transform_7(%arg0: i32) -> (i32, i32) {
    %c0_i32 = arith.constant 0 : i32
    %c0_i32_0 = arith.constant 0 : i32
    %c0_i32_1 = arith.constant 0 : i32
    return %c0_i32, %c0_i32_0 : i32, i32
  }
  func.func @transform_8(%arg0: i32) -> (i32, i32) {
    %c0_i32 = arith.constant 0 : i32
    %c0_i32_0 = arith.constant 0 : i32
    %c0_i32_1 = arith.constant 0 : i32
    return %c0_i32, %c0_i32_0 : i32, i32
  }
  func.func @transform_9(%arg0: i32) -> (i32, i32) {
    %c0_i32 = arith.constant 0 : i32
    %c0_i32_0 = arith.constant 0 : i32
    return %arg0, %c0_i32 : i32, i32
  }
}

</mosaic_0001>

<llo_original>
// kernel: tpu_custom_call.1
$region0: #{tpu_custom_call.1}
  #allocation0 [shape = 'u32[]', space=smem, size = 0x4, offset = 0x4, fixed_abs, tag = 'smem constant byte address 0x4 - core index']
  #allocation1 [shape = 'u32[72,128]{1,0:T(1,128)}', space=vmem, size = 0x9000, scoped, tag = 'internal scratch']
  %s0 = inlined_call_operand.vmem [shape: bf16[256,32], index: 0, kind: input, shape index: {}]
  %s1 = inlined_call_operand.vmem [shape: bf16[256,10], index: 1, kind: input, shape index: {}]
  %s2 = inlined_call_operand.vmem [shape: bf16[32,64], index: 2, kind: input, shape index: {}]
  %s3 = inlined_call_operand.vmem [shape: bf16[10,64], index: 3, kind: input, shape index: {}]
  %s4 = inlined_call_operand.vmem [shape: f32[1,64], index: 4, kind: input, shape index: {}]
  %s5 = inlined_call_operand.vmem [shape: bf16[64,32], index: 5, kind: input, shape index: {}]
  %s6 = inlined_call_operand.vmem [shape: f32[1,32], index: 6, kind: input, shape index: {}]
  %s7 = inlined_call_operand.vmem [shape: bf16[32,128], index: 7, kind: input, shape index: {}]
  %s8 = inlined_call_operand.vmem [shape: f32[1,128], index: 8, kind: input, shape index: {}]
  %s9 = inlined_call_operand.hbm [shape: f32[256,128], index: 9, kind: output, shape index: {}]
  %s10 = sld [smem:[#allocation0]]
  $region69: #{tpu_custom_call.1} parent=0
    _
  %s12 = ssub.s32 1, %s10
  %s13 = scalar_select 0, %s12, %s10
  $region1: #{tpu_custom_call.1} parent=0
    #allocation2 [shape = 'u8[131072]{0}', space=vmem, size = 0x20000, scoped, tag = 'output window, operand 0']
    #allocation3 [shape = 's32[2]{0}', space=sflag, size = 0x8, scoped, tag = 'scoped memory for tpu_custom_call.1']
    %14 = vsyncpa [#allocation3], 0
    %s15 = scalar_lea.sflag [#allocation3], 1
    %16 = vsyncpa %s15, 0
    loop: start=0, step=1, limit=4
    $region2: #{tpu_custom_call.1} parent=1 // loop_pre_header
      _
    $region3: #{tpu_custom_call.1} parent=1 // loop_header
      %s18 = sphi 0, %s22
      %p19 = scmp.ge.s32.totalorder %s18, 4
      %s28 = sphi 0, %s30
      %s31 = sphi 0, %s28
      %s32 = sphi 0, %s31
      %s48 = sphi 0, %s32
      %s54 = sphi 0, %s56
      %s57 = sphi 0, %s54
      %s58 = sphi 0, %s57
      %s74 = sphi 0, %s58
      %s78 = sphi 0, %s78
      %s80 = sphi 0, %s78
      %s81 = sphi 0, %s80
      %s95 = sphi 0, %s81
      %s99 = sphi 0, %s99
      %s101 = sphi 0, %s99
      %s102 = sphi 0, %s101
      %s116 = sphi 0, %s102
      %s120 = sphi 0, %s120
      %s122 = sphi 0, %s120
      %s123 = sphi 0, %s122
      %s137 = sphi 0, %s123
      %s141 = sphi 0, %s141
      %s143 = sphi 0, %s141
      %s144 = sphi 0, %s143
      %s158 = sphi 0, %s144
      %s162 = sphi 0, %s162
      %s164 = sphi 0, %s162
      %s165 = sphi 0, %s164
      %s179 = sphi 0, %s165
      %s183 = sphi 0, %s183
      %s185 = sphi 0, %s183
      %s186 = sphi 0, %s185
      %s200 = sphi 0, %s186
      %s204 = sphi 0, %s204
      %s206 = sphi 0, %s204
      %s207 = sphi 0, %s206
      %s221 = sphi 0, %s207
      %s227 = sphi 0, %s229
      %s230 = sphi 0, %s227
      %s231 = sphi 0, %s230
      %s247 = sphi 0, %s231
    $region4: #{tpu_custom_call.1} parent=1 // loop_header_branch
      %21 = sbr.rel (%p19) target = $region8
    $region5: #{tpu_custom_call.1} parent=1 // loop_body
      %s23 = ssub.s32 %s18, 1
      %s24 = ssub.s32 %s18, 2
      %s25 = sadd.s32 %s18, 1
      %s26 = ssub.s32 %s18, %s25
      %p27 = scmp.eq.s32.totalorder %s26, 0
      %s29 = sadd.s32 %s28, 1
      %s30 = scalar_select %p27, %s28, %s29
      %p33 = pneg %p27
      %p34 = scmp.eq.s32.totalorder %s18, 1
      %p35 = por %p33, %p34
      %p36 = scmp.ne.s32.totalorder %s28, %s31
      %p37 = scmp.eq.s32.totalorder %s18, 0
      %p38 = por %p36, %p37
      %p39 = scmp.ne.s32.totalorder %s28, %s31
      %p40 = scmp.eq.s32.totalorder %s23, 1
      %p41 = por %p39, %p40
      %p42 = scmp.ne.s32.totalorder %s31, %s32
      %p43 = scmp.eq.s32.totalorder %s23, 0
      %p44 = por %p42, %p43
      %p45 = scmp.ne.s32.totalorder %s31, %s32
      %p46 = scmp.eq.s32.totalorder %s24, 1
      %p47 = por %p45, %p46
      %p49 = scmp.ne.s32.totalorder %s32, %s48
      %p50 = scmp.eq.s32.totalorder %s24, 0
      %p51 = por %p49, %p50
      %s52 = ssub.s32 %s18, %s25
      %p53 = scmp.eq.s32.totalorder %s52, 0
      %s55 = sadd.s32 %s54, 1
      %s56 = scalar_select %p53, %s54, %s55
      %p59 = pneg %p53
      %p60 = scmp.eq.s32.totalorder %s18, 1
      %p61 = por %p59, %p60
      %p62 = scmp.ne.s32.totalorder %s54, %s57
      %p63 = scmp.eq.s32.totalorder %s18, 0
      %p64 = por %p62, %p63
      %p65 = scmp.ne.s32.totalorder %s54, %s57
      %p66 = scmp.eq.s32.totalorder %s23, 1
      %p67 = por %p65, %p66
      %p68 = scmp.ne.s32.totalorder %s57, %s58
      %p69 = scmp.eq.s32.totalorder %s23, 0
      %p70 = por %p68, %p69
      %p71 = scmp.ne.s32.totalorder %s57, %s58
      %p72 = scmp.eq.s32.totalorder %s24, 1
      %p73 = por %p71, %p72
      %p75 = scmp.ne.s32.totalorder %s58, %s74
      %p76 = scmp.eq.s32.totalorder %s24, 0
      %p77 = por %p75, %p76
      %s79 = sadd.s32 %s78, 1
      %p82 = scmp.eq.s32.totalorder %s18, 1
      %p83 = scmp.ne.s32.totalorder %s78, %s80
      %p84 = scmp.eq.s32.totalorder %s18, 0
      %p85 = por %p83, %p84
      %p86 = scmp.ne.s32.totalorder %s78, %s80
      %p87 = scmp.eq.s32.totalorder %s23, 1
      %p88 = por %p86, %p87
      %p89 = scmp.ne.s32.totalorder %s80, %s81
      %p90 = scmp.eq.s32.totalorder %s23, 0
      %p91 = por %p89, %p90
      %p92 = scmp.ne.s32.totalorder %s80, %s81
      %p93 = scmp.eq.s32.totalorder %s24, 1
      %p94 = por %p92, %p93
      %p96 = scmp.ne.s32.totalorder %s81, %s95
      %p97 = scmp.eq.s32.totalorder %s24, 0
      %p98 = por %p96, %p97
      %s100 = sadd.s32 %s99, 1
      %p103 = scmp.eq.s32.totalorder %s18, 1
      %p104 = scmp.ne.s32.totalorder %s99, %s101
      %p105 = scmp.eq.s32.totalorder %s18, 0
      %p106 = por %p104, %p105
      %p107 = scmp.ne.s32.totalorder %s99, %s101
      %p108 = scmp.eq.s32.totalorder %s23, 1
      %p109 = por %p107, %p108
      %p110 = scmp.ne.s32.totalorder %s101, %s102
      %p111 = scmp.eq.s32.totalorder %s23, 0
      %p112 = por %p110, %p111
      %p113 = scmp.ne.s32.totalorder %s101, %s102
      %p114 = scmp.eq.s32.totalorder %s24, 1
      %p115 = por %p113, %p114
      %p117 = scmp.ne.s32.totalorder %s102, %s116
      %p118 = scmp.eq.s32.totalorder %s24, 0
      %p119 = por %p117, %p118
      %s121 = sadd.s32 %s120, 1
      %p124 = scmp.eq.s32.totalorder %s18, 1
      %p125 = scmp.ne.s32.totalorder %s120, %s122
      %p126 = scmp.eq.s32.totalorder %s18, 0
      %p127 = por %p125, %p126
      %p128 = scmp.ne.s32.totalorder %s120, %s122
      %p129 = scmp.eq.s32.totalorder %s23, 1
      %p130 = por %p128, %p129
      %p131 = scmp.ne.s32.totalorder %s122, %s123
      %p132 = scmp.eq.s32.totalorder %s23, 0
      %p133 = por %p131, %p132
      %p134 = scmp.ne.s32.totalorder %s122, %s123
      %p135 = scmp.eq.s32.totalorder %s24, 1
      %p136 = por %p134, %p135
      %p138 = scmp.ne.s32.totalorder %s123, %s137
      %p139 = scmp.eq.s32.totalorder %s24, 0
      %p140 = por %p138, %p139
      %s142 = sadd.s32 %s141, 1
      %p145 = scmp.eq.s32.totalorder %s18, 1
      %p146 = scmp.ne.s32.totalorder %s141, %s143
      %p147 = scmp.eq.s32.totalorder %s18, 0
      %p148 = por %p146, %p147
      %p149 = scmp.ne.s32.totalorder %s141, %s143
      %p150 = scmp.eq.s32.totalorder %s23, 1
      %p151 = por %p149, %p150
      %p152 = scmp.ne.s32.totalorder %s143, %s144
      %p153 = scmp.eq.s32.totalorder %s23, 0
      %p154 = por %p152, %p153
      %p155 = scmp.ne.s32.totalorder %s143, %s144
      %p156 = scmp.eq.s32.totalorder %s24, 1
      %p157 = por %p155, %p156
      %p159 = scmp.ne.s32.totalorder %s144, %s158
      %p160 = scmp.eq.s32.totalorder %s24, 0
      %p161 = por %p159, %p160
      %s163 = sadd.s32 %s162, 1
      %p166 = scmp.eq.s32.totalorder %s18, 1
      %p167 = scmp.ne.s32.totalorder %s162, %s164
      %p168 = scmp.eq.s32.totalorder %s18, 0
      %p169 = por %p167, %p168
      %p170 = scmp.ne.s32.totalorder %s162, %s164
      %p171 = scmp.eq.s32.totalorder %s23, 1
      %p172 = por %p170, %p171
      %p173 = scmp.ne.s32.totalorder %s164, %s165
      %p174 = scmp.eq.s32.totalorder %s23, 0
      %p175 = por %p173, %p174
      %p176 = scmp.ne.s32.totalorder %s164, %s165
      %p177 = scmp.eq.s32.totalorder %s24, 1
      %p178 = por %p176, %p177
      %p180 = scmp.ne.s32.totalorder %s165, %s179
      %p181 = scmp.eq.s32.totalorder %s24, 0
      %p182 = por %p180, %p181
      %s184 = sadd.s32 %s183, 1
      %p187 = scmp.eq.s32.totalorder %s18, 1
      %p188 = scmp.ne.s32.totalorder %s183, %s185
      %p189 = scmp.eq.s32.totalorder %s18, 0
      %p190 = por %p188, %p189
      %p191 = scmp.ne.s32.totalorder %s183, %s185
      %p192 = scmp.eq.s32.totalorder %s23, 1
      %p193 = por %p191, %p192
      %p194 = scmp.ne.s32.totalorder %s185, %s186
      %p195 = scmp.eq.s32.totalorder %s23, 0
      %p196 = por %p194, %p195
      %p197 = scmp.ne.s32.totalorder %s185, %s186
      %p198 = scmp.eq.s32.totalorder %s24, 1
      %p199 = por %p197, %p198
      %p201 = scmp.ne.s32.totalorder %s186, %s200
      %p202 = scmp.eq.s32.totalorder %s24, 0
      %p203 = por %p201, %p202
      %s205 = sadd.s32 %s204, 1
      %p208 = scmp.eq.s32.totalorder %s18, 1
      %p209 = scmp.ne.s32.totalorder %s204, %s206
      %p210 = scmp.eq.s32.totalorder %s18, 0
      %p211 = por %p209, %p210
      %p212 = scmp.ne.s32.totalorder %s204, %s206
      %p213 = scmp.eq.s32.totalorder %s23, 1
      %p214 = por %p212, %p213
      %p215 = scmp.ne.s32.totalorder %s206, %s207
      %p216 = scmp.eq.s32.totalorder %s23, 0
      %p217 = por %p215, %p216
      %p218 = scmp.ne.s32.totalorder %s206, %s207
      %p219 = scmp.eq.s32.totalorder %s24, 1
      %p220 = por %p218, %p219
      %p222 = scmp.ne.s32.totalorder %s207, %s221
      %p223 = scmp.eq.s32.totalorder %s24, 0
      %p224 = por %p222, %p223
      %s225 = ssub.s32 %s18, %s25
      %p226 = scmp.eq.s32.totalorder %s225, 0
      %s228 = sadd.s32 %s227, 1
      %s229 = scalar_select %p226, %s227, %s228
      %p232 = pneg %p226
      %p233 = scmp.eq.s32.totalorder %s18, 1
      %p234 = por %p232, %p233
      %p235 = scmp.ne.s32.totalorder %s227, %s230
      %p236 = scmp.eq.s32.totalorder %s18, 0
      %p237 = por %p235, %p236
      %p238 = scmp.ne.s32.totalorder %s227, %s230
      %p239 = scmp.eq.s32.totalorder %s23, 1
      %p240 = por %p238, %p239
      %p241 = scmp.ne.s32.totalorder %s230, %s231
      %p242 = scmp.eq.s32.totalorder %s23, 0
      %p243 = por %p241, %p242
      %p244 = scmp.ne.s32.totalorder %s230, %s231
      %p245 = scmp.eq.s32.totalorder %s24, 1
      %p246 = por %p244, %p245
      %p248 = scmp.ne.s32.totalorder %s231, %s247
      %p249 = scmp.eq.s32.totalorder %s24, 0
      %p250 = por %p248, %p249
      %p251 = scmp.le.s32.totalorder 1, %s18
      %p252 = scmp.lt.s32.totalorder %s18, 3
      %p253 = pnand %p251, %p252
      %p254 = pneg %p253
      // Predicated region
      $region9: #{tpu_custom_call.1} parent=5 // pred_check
        _
      $region10: #{tpu_custom_call.1} parent=5 // pred_check_branch
        %256 = sbr.rel (%p253) target = $region12
      $region11: #{tpu_custom_call.1} parent=5 // pred_region
        %s257 = ssub.s32 %s18, 1
        // Predicated region
        $region13: #{tpu_custom_call.1} parent=11 // pred_check
          %p258 = pneg %p91
        $region14: #{tpu_custom_call.1} parent=11 // pred_check_branch
          %260 = sbr.rel (%p258) target = $region16
        $region15: #{tpu_custom_call.1} parent=11 // pred_region
          _
        $region16: #{tpu_custom_call.1} parent=11 // pred_fallthru
          _
        // Predicated region
        $region17: #{tpu_custom_call.1} parent=11 // pred_check
          %p261 = pneg %p112
        $region18: #{tpu_custom_call.1} parent=11 // pred_check_branch
          %263 = sbr.rel (%p261) target = $region20
        $region19: #{tpu_custom_call.1} parent=11 // pred_region
          _
        $region20: #{tpu_custom_call.1} parent=11 // pred_fallthru
          _
        // Predicated region
        $region21: #{tpu_custom_call.1} parent=11 // pred_check
          %p264 = pneg %p133
        $region22: #{tpu_custom_call.1} parent=11 // pred_check_branch
          %266 = sbr.rel (%p264) target = $region24
        $region23: #{tpu_custom_call.1} parent=11 // pred_region
          _
        $region24: #{tpu_custom_call.1} parent=11 // pred_fallthru
          _
        // Predicated region
        $region25: #{tpu_custom_call.1} parent=11 // pred_check
          %p267 = pneg %p154
        $region26: #{tpu_custom_call.1} parent=11 // pred_check_branch
          %269 = sbr.rel (%p267) target = $region28
        $region27: #{tpu_custom_call.1} parent=11 // pred_region
          _
        $region28: #{tpu_custom_call.1} parent=11 // pred_fallthru
          _
        // Predicated region
        $region29: #{tpu_custom_call.1} parent=11 // pred_check
          %p270 = pneg %p175
        $region30: #{tpu_custom_call.1} parent=11 // pred_check_branch
          %272 = sbr.rel (%p270) target = $region32
        $region31: #{tpu_custom_call.1} parent=11 // pred_region
          _
        $region32: #{tpu_custom_call.1} parent=11 // pred_fallthru
          _
        // Predicated region
        $region33: #{tpu_custom_call.1} parent=11 // pred_check
          %p273 = pneg %p196
        $region34: #{tpu_custom_call.1} parent=11 // pred_check_branch
          %275 = sbr.rel (%p273) target = $region36
        $region35: #{tpu_custom_call.1} parent=11 // pred_region
          _
        $region36: #{tpu_custom_call.1} parent=11 // pred_fallthru
          _
        // Predicated region
        $region37: #{tpu_custom_call.1} parent=11 // pred_check
          %p276 = pneg %p217
        $region38: #{tpu_custom_call.1} parent=11 // pred_check_branch
          %278 = sbr.rel (%p276) target = $region40
        $region39: #{tpu_custom_call.1} parent=11 // pred_region
          _
        $region40: #{tpu_custom_call.1} parent=11 // pred_fallthru
          _
      $region12: #{tpu_custom_call.1} parent=5 // pred_fallthru
        _
      %p279 = scmp.lt.s32.totalorder %s18, 2
      // Predicated region
      $region41: #{tpu_custom_call.1} parent=5 // pred_check
        %p280 = pneg %p279
      $region42: #{tpu_custom_call.1} parent=5 // pred_check_branch
        %282 = sbr.rel (%p280) target = $region44
      $region43: #{tpu_custom_call.1} parent=5 // pred_region
        // Predicated region
        $region45: #{tpu_custom_call.1} parent=43 // pred_check
          %p283 = pneg %p38
        $region46: #{tpu_custom_call.1} parent=43 // pred_check_branch
          %285 = sbr.rel (%p283) target = $region48
        $region47: #{tpu_custom_call.1} parent=43 // pred_region
          %s286 = smul.u32 16, %s18
          %p287 = scmp.lt.s32.totalorder %s286, 31
          %s288 = scalar_select %p287, %s286, 31
          %s289 = smul.addr %s288, 4
          %s290 = scalar_lea.vmem %s0, %s289
          %s291 = smul.u32 16, %s18
        $region48: #{tpu_custom_call.1} parent=43 // pred_fallthru
          _
        // Predicated region
        $region49: #{tpu_custom_call.1} parent=43 // pred_check
          %p292 = pneg %p64
        $region50: #{tpu_custom_call.1} parent=43 // pred_check_branch
          %294 = sbr.rel (%p292) target = $region52
        $region51: #{tpu_custom_call.1} parent=43 // pred_region
          %s295 = smul.u32 16, %s18
          %p296 = scmp.lt.s32.totalorder %s295, 31
          %s297 = scalar_select %p296, %s295, 31
          %s298 = smul.addr %s297, 4
          %s299 = scalar_lea.vmem %s1, %s298
          %s300 = smul.u32 16, %s18
        $region52: #{tpu_custom_call.1} parent=43 // pred_fallthru
          _
      $region44: #{tpu_custom_call.1} parent=5 // pred_fallthru
        _
      %p301 = scmp.le.s32.totalorder 1, %s18
      %p302 = scmp.lt.s32.totalorder %s18, 3
      %p303 = pnand %p301, %p302
      %p304 = pneg %p303
      // Predicated region
      $region53: #{tpu_custom_call.1} parent=5 // pred_check
        _
      $region54: #{tpu_custom_call.1} parent=5 // pred_check_branch
        %306 = sbr.rel (%p303) target = $region56
      $region55: #{tpu_custom_call.1} parent=5 // pred_region
        %s307 = ssub.s32 %s18, 1
        %s308 = smul.u32 16, %s23
        %p309 = scmp.lt.s32.totalorder %s308, 31
        %s310 = scalar_select %p309, %s308, 31
        %s311 = smul.addr %s310, 4
        %s312 = scalar_lea.vmem %s0, %s311
        %p313 = pneg %p44
        %p314 = pneg %p41
        %s315 = smul.u32 16, %s23
        %p316 = scmp.lt.s32.totalorder %s315, 31
        %s317 = scalar_select %p316, %s315, 31
        %s318 = smul.addr %s317, 4
        %s319 = scalar_lea.vmem %s1, %s318
        %p320 = pneg %p70
        %p321 = pneg %p67
        %p322 = pneg %p91
        %p323 = pneg %p88
        %p324 = pneg %p112
        %p325 = pneg %p109
        %p326 = pneg %p133
        %p327 = pneg %p130
        %p328 = pneg %p154
        %p329 = pneg %p151
        %p330 = pneg %p175
        %p331 = pneg %p172
        %p332 = pneg %p196
        %p333 = pneg %p193
        %p334 = pneg %p217
        %p335 = pneg %p214
        %p336 = pneg %p243
        %p337 = pneg %p240
        %s338 = sand.u32 %s230, 1
        %s339 = scalar_lea.sflag [#allocation3], %s338
        %s340 = sand.u32 %s230, 1
        %s341 = smul.addr %s340, 128
        %s342 = scalar_lea.vmem [#allocation2], %s341
        %s343 = smul.u32 16, %s23
        %p344 = scmp.lt.s32.totalorder %s343, 31
        %s345 = scalar_select %p344, %s343, 31
        %s346 = smul.addr %s345, 4
        %s347 = scalar_lea.vmem %s0, %s346
        %s348 = smul.u32 16, %s23
        %s349 = smul.u32 16, %s23
        %p350 = scmp.lt.s32.totalorder %s349, 31
        %s351 = scalar_select %p350, %s349, 31
        %s352 = smul.addr %s351, 4
        %s353 = scalar_lea.vmem %s1, %s352
        %s354 = smul.u32 16, %s23
        %s355 = smul.u32 16, %s23
        %v357 = vld [vmem:[%s347] sm:$0xf]
        %v358 = vld [vmem:[%s347 + $0x4] sm:$0xf]
        %v359 = vld [vmem:[%s347 + $0x8] sm:$0xf]
        %v360 = vld [vmem:[%s347 + $0xc] sm:$0xf]
        %v361 = vld [vmem:[%s347 + $0x10] sm:$0xf]
        %v362 = vld [vmem:[%s347 + $0x14] sm:$0xf]
        %v363 = vld [vmem:[%s347 + $0x18] sm:$0xf]
        %v364 = vld [vmem:[%s347 + $0x1c] sm:$0xf]
        %v365 = vld [vmem:[%s347 + $0x20] sm:$0xf]
        %v366 = vld [vmem:[%s347 + $0x24] sm:$0xf]
        %v367 = vld [vmem:[%s347 + $0x28] sm:$0xf]
        %v368 = vld [vmem:[%s347 + $0x2c] sm:$0xf]
        %v369 = vld [vmem:[%s347 + $0x30] sm:$0xf]
        %v370 = vld [vmem:[%s347 + $0x34] sm:$0xf]
        %v371 = vld [vmem:[%s347 + $0x38] sm:$0xf]
        %v372 = vld [vmem:[%s347 + $0x3c] sm:$0xf]
        %v373 = vld [vmem:[%s2] sm:$0xf]
        %v374 = vld [vmem:[%s2 + $0x4] sm:$0xf]
        %v375 = vld [vmem:[%s2 + $0x8] sm:$0xf]
        %v376 = vld [vmem:[%s2 + $0xc] sm:$0xf]
        %v377 = vld [vmem:[%s353] sm:$0xf]
        %v378 = vld [vmem:[%s353 + $0x4] sm:$0xf]
        %v379 = vld [vmem:[%s353 + $0x8] sm:$0xf]
        %v380 = vld [vmem:[%s353 + $0xc] sm:$0xf]
        %v381 = vld [vmem:[%s353 + $0x10] sm:$0xf]
        %v382 = vld [vmem:[%s353 + $0x14] sm:$0xf]
        %v383 = vld [vmem:[%s353 + $0x18] sm:$0xf]
        %v384 = vld [vmem:[%s353 + $0x1c] sm:$0xf]
        %v385 = vld [vmem:[%s353 + $0x20] sm:$0xf]
        %v386 = vld [vmem:[%s353 + $0x24] sm:$0xf]
        %v387 = vld [vmem:[%s353 + $0x28] sm:$0xf]
        %v388 = vld [vmem:[%s353 + $0x2c] sm:$0xf]
        %v389 = vld [vmem:[%s353 + $0x30] sm:$0xf]
        %v390 = vld [vmem:[%s353 + $0x34] sm:$0xf]
        %v391 = vld [vmem:[%s353 + $0x38] sm:$0xf]
        %v392 = vld [vmem:[%s353 + $0x3c] sm:$0xf]
        %v393 = vld [vmem:[%s3] sm:$0xf]
        %v394 = vld [vmem:[%s3 + $0x4] sm:$0x1]
        %v411 = vunpack.c.l.b16 %v377
        %v412 = vunpack.c.l.b16 %v378
        %v413 = vunpack.c.l.b16 %v379
        %v414 = vunpack.c.l.b16 %v380
        %v415 = vunpack.c.l.b16 %v381
        %v416 = vunpack.c.l.b16 %v382
        %v417 = vunpack.c.l.b16 %v383
        %v418 = vunpack.c.l.b16 %v384
        %v419 = vunpack.c.l.b16 %v385
        %v420 = vunpack.c.l.b16 %v386
        %v421 = vunpack.c.l.b16 %v387
        %v422 = vunpack.c.l.b16 %v388
        %v423 = vunpack.c.l.b16 %v389
        %v424 = vunpack.c.l.b16 %v390
        %v425 = vunpack.c.l.b16 %v391
        %v426 = vunpack.c.l.b16 %v392
        %v427 = vpack.c.b16 %v412, %v411
        %v428 = vpack.c.b16 %v414, %v413
        %v429 = vpack.c.b16 %v416, %v415
        %v430 = vpack.c.b16 %v418, %v417
        %v431 = vpack.c.b16 %v420, %v419
        %v432 = vpack.c.b16 %v422, %v421
        %v433 = vpack.c.b16 %v424, %v423
        %v434 = vpack.c.b16 %v426, %v425
        %v437 = vunpack.c.l.b16 %v393
        %v438 = vunpack.c.l.b16 %v394
        %v439 = vpack.c.b16 %v438, %v437
        %vm440 = vcmask 80896
        %v442 = vsel %vm440, %v427, 0
        %v445 = vsel %vm440, %v428, 0
        %v448 = vsel %vm440, %v429, 0
        %v451 = vsel %vm440, %v430, 0
        %v454 = vsel %vm440, %v431, 0
        %v457 = vsel %vm440, %v432, 0
        %v460 = vsel %vm440, %v433, 0
        %v463 = vsel %vm440, %v434, 0
        %vm465 = vcmask 1044480
        %v467 = vsel %vm465, %v439, 0
        %469 = vmatpush.bf16.msra.mxu0 0
        %470 = vmatpush.bf16.msra.mxu0 0
        %471 = vmatpush.bf16.msra.mxu0 0
        %472 = vmatpush.bf16.msra.mxu0 0
        %473 = vmatpush.bf16.msra.mxu0 0
        %474 = vmatpush.bf16.msra.mxu0 0
        %475 = vmatpush.bf16.msra.mxu0 0
        %476 = vmatpush.bf16.msra.mxu0 %v467
        %477 = vmatmul.bf16.gmra.mxu0 %v442
        %v478 = vpop.f32.mrf.mxu0
        %v479 = vadd.f32 0.0, %v478
        %v480 = vpop.f32.mrf.mxu0
        %v481 = vadd.f32 0.0, %v480
        %482 = vmatmul.bf16.gmra.mxu0 %v445
        %v483 = vpop.f32.mrf.mxu0
        %v484 = vadd.f32 0.0, %v483
        %v485 = vpop.f32.mrf.mxu0
        %v486 = vadd.f32 0.0, %v485
        %487 = vmatmul.bf16.gmra.mxu0 %v448
        %v488 = vpop.f32.mrf.mxu0
        %v489 = vadd.f32 0.0, %v488
        %v490 = vpop.f32.mrf.mxu0
        %v491 = vadd.f32 0.0, %v490
        %492 = vmatmul.bf16.gmra.mxu0 %v451
        %v493 = vpop.f32.mrf.mxu0
        %v494 = vadd.f32 0.0, %v493
        %v495 = vpop.f32.mrf.mxu0
        %v496 = vadd.f32 0.0, %v495
        %497 = vmatmul.bf16.gmra.mxu0 %v454
        %v498 = vpop.f32.mrf.mxu0
        %v499 = vadd.f32 0.0, %v498
        %v500 = vpop.f32.mrf.mxu0
        %v501 = vadd.f32 0.0, %v500
        %502 = vmatmul.bf16.gmra.mxu0 %v457
        %v503 = vpop.f32.mrf.mxu0
        %v504 = vadd.f32 0.0, %v503
        %v505 = vpop.f32.mrf.mxu0
        %v506 = vadd.f32 0.0, %v505
        %507 = vmatmul.bf16.gmra.mxu0 %v460
        %v508 = vpop.f32.mrf.mxu0
        %v509 = vadd.f32 0.0, %v508
        %v510 = vpop.f32.mrf.mxu0
        %v511 = vadd.f32 0.0, %v510
        %512 = vmatmul.bf16.gmra.mxu0 %v463
        %v513 = vpop.f32.mrf.mxu0
        %v514 = vadd.f32 0.0, %v513
        %v515 = vpop.f32.mrf.mxu0
        %v516 = vadd.f32 0.0, %v515
        %517 = vdwg.mxu0
        %v534 = vunpack.c.l.b16 %v357
        %v535 = vunpack.c.l.b16 %v358
        %v536 = vunpack.c.l.b16 %v359
        %v537 = vunpack.c.l.b16 %v360
        %v538 = vunpack.c.l.b16 %v361
        %v539 = vunpack.c.l.b16 %v362
        %v540 = vunpack.c.l.b16 %v363
        %v541 = vunpack.c.l.b16 %v364
        %v542 = vunpack.c.l.b16 %v365
        %v543 = vunpack.c.l.b16 %v366
        %v544 = vunpack.c.l.b16 %v367
        %v545 = vunpack.c.l.b16 %v368
        %v546 = vunpack.c.l.b16 %v369
        %v547 = vunpack.c.l.b16 %v370
        %v548 = vunpack.c.l.b16 %v371
        %v549 = vunpack.c.l.b16 %v372
        %v550 = vpack.c.b16 %v535, %v534
        %v551 = vpack.c.b16 %v537, %v536
        %v552 = vpack.c.b16 %v539, %v538
        %v553 = vpack.c.b16 %v541, %v540
        %v554 = vpack.c.b16 %v543, %v542
        %v555 = vpack.c.b16 %v545, %v544
        %v556 = vpack.c.b16 %v547, %v546
        %v557 = vpack.c.b16 %v549, %v548
        %v562 = vunpack.c.l.b16 %v373
        %v563 = vunpack.c.l.b16 %v374
        %v564 = vunpack.c.l.b16 %v375
        %v565 = vunpack.c.l.b16 %v376
        %v566 = vpack.c.b16 %v563, %v562
        %v567 = vpack.c.b16 %v565, %v564
        %vm570 = vcmask 261120
        %v572 = vsel %vm570, %v550, 0
        %v575 = vsel %vm570, %v551, 0
        %v578 = vsel %vm570, %v552, 0
        %v581 = vsel %vm570, %v553, 0
        %v584 = vsel %vm570, %v554, 0
        %v587 = vsel %vm570, %v555, 0
        %v590 = vsel %vm570, %v556, 0
        %v593 = vsel %vm570, %v557, 0
        %595 = vmatpush.bf16.msra.mxu0 0
        %596 = vmatpush.bf16.msra.mxu0 0
        %597 = vmatpush.bf16.msra.mxu0 0
        %598 = vmatpush.bf16.msra.mxu0 0
        %599 = vmatpush.bf16.msra.mxu0 0
        %600 = vmatpush.bf16.msra.mxu0 0
        %601 = vmatpush.bf16.msra.mxu0 %v567
        %602 = vmatpush.bf16.msra.mxu0 %v566
        %603 = vmatmul.bf16.gmra.mxu0 %v572
        %v604 = vpop.f32.mrf.mxu0
        %v605 = vadd.f32 %v479, %v604
        %v606 = vpop.f32.mrf.mxu0
        %v607 = vadd.f32 %v481, %v606
        %608 = vmatmul.bf16.gmra.mxu0 %v575
        %v609 = vpop.f32.mrf.mxu0
        %v610 = vadd.f32 %v484, %v609
        %v611 = vpop.f32.mrf.mxu0
        %v612 = vadd.f32 %v486, %v611
        %613 = vmatmul.bf16.gmra.mxu0 %v578
        %v614 = vpop.f32.mrf.mxu0
        %v615 = vadd.f32 %v489, %v614
        %v616 = vpop.f32.mrf.mxu0
        %v617 = vadd.f32 %v491, %v616
        %618 = vmatmul.bf16.gmra.mxu0 %v581
        %v619 = vpop.f32.mrf.mxu0
        %v620 = vadd.f32 %v494, %v619
        %v621 = vpop.f32.mrf.mxu0
        %v622 = vadd.f32 %v496, %v621
        %623 = vmatmul.bf16.gmra.mxu0 %v584
        %v624 = vpop.f32.mrf.mxu0
        %v625 = vadd.f32 %v499, %v624
        %v626 = vpop.f32.mrf.mxu0
        %v627 = vadd.f32 %v501, %v626
        %628 = vmatmul.bf16.gmra.mxu0 %v587
        %v629 = vpop.f32.mrf.mxu0
        %v630 = vadd.f32 %v504, %v629
        %v631 = vpop.f32.mrf.mxu0
        %v632 = vadd.f32 %v506, %v631
        %633 = vmatmul.bf16.gmra.mxu0 %v590
        %v634 = vpop.f32.mrf.mxu0
        %v635 = vadd.f32 %v509, %v634
        %v636 = vpop.f32.mrf.mxu0
        %v637 = vadd.f32 %v511, %v636
        %638 = vmatmul.bf16.gmra.mxu0 %v593
        %v639 = vpop.f32.mrf.mxu0
        %v640 = vadd.f32 %v514, %v639
        %v641 = vpop.f32.mrf.mxu0
        %v642 = vadd.f32 %v516, %v641
        %643 = vdwg.mxu0
        %v644 = vld [vmem:[%s4] sm:$0x1]
        %v646 = vperm.slane %v644, 0
        %v648 = vadd.f32 %v605, %v646
        %v649 = vadd.f32 %v607, %v646
        %v650 = vadd.f32 %v610, %v646
        %v651 = vadd.f32 %v612, %v646
        %v652 = vadd.f32 %v615, %v646
        %v653 = vadd.f32 %v617, %v646
        %v654 = vadd.f32 %v620, %v646
        %v655 = vadd.f32 %v622, %v646
        %v656 = vadd.f32 %v625, %v646
        %v657 = vadd.f32 %v627, %v646
        %v658 = vadd.f32 %v630, %v646
        %v659 = vadd.f32 %v632, %v646
        %v660 = vadd.f32 %v635, %v646
        %v661 = vadd.f32 %v637, %v646
        %v662 = vadd.f32 %v640, %v646
        %v663 = vadd.f32 %v642, %v646
        %vm664 = vcmp.gt.f32.partialorder %v648, 0.0
        %vm665 = vcmp.gt.f32.partialorder %v649, 0.0
        %vm666 = vcmp.gt.f32.partialorder %v650, 0.0
        %vm667 = vcmp.gt.f32.partialorder %v651, 0.0
        %vm668 = vcmp.gt.f32.partialorder %v652, 0.0
        %vm669 = vcmp.gt.f32.partialorder %v653, 0.0
        %vm670 = vcmp.gt.f32.partialorder %v654, 0.0
        %vm671 = vcmp.gt.f32.partialorder %v655, 0.0
        %vm672 = vcmp.gt.f32.partialorder %v656, 0.0
        %vm673 = vcmp.gt.f32.partialorder %v657, 0.0
        %vm674 = vcmp.gt.f32.partialorder %v658, 0.0
        %vm675 = vcmp.gt.f32.partialorder %v659, 0.0
        %vm676 = vcmp.gt.f32.partialorder %v660, 0.0
        %vm677 = vcmp.gt.f32.partialorder %v661, 0.0
        %vm678 = vcmp.gt.f32.partialorder %v662, 0.0
        %vm679 = vcmp.gt.f32.partialorder %v663, 0.0
        %v680 = vmul.f32 %v648, 0.2
        %v681 = vmul.f32 %v649, 0.2
        %v682 = vmul.f32 %v650, 0.2
        %v683 = vmul.f32 %v651, 0.2
        %v684 = vmul.f32 %v652, 0.2
        %v685 = vmul.f32 %v653, 0.2
        %v686 = vmul.f32 %v654, 0.2
        %v687 = vmul.f32 %v655, 0.2
        %v688 = vmul.f32 %v656, 0.2
        %v689 = vmul.f32 %v657, 0.2
        %v690 = vmul.f32 %v658, 0.2
        %v691 = vmul.f32 %v659, 0.2
        %v692 = vmul.f32 %v660, 0.2
        %v693 = vmul.f32 %v661, 0.2
        %v694 = vmul.f32 %v662, 0.2
        %v695 = vmul.f32 %v663, 0.2
        %v696 = vsel %vm664, %v648, %v680
        %v697 = vsel %vm665, %v649, %v681
        %v698 = vsel %vm666, %v650, %v682
        %v699 = vsel %vm667, %v651, %v683
        %v700 = vsel %vm668, %v652, %v684
        %v701 = vsel %vm669, %v653, %v685
        %v702 = vsel %vm670, %v654, %v686
        %v703 = vsel %vm671, %v655, %v687
        %v704 = vsel %vm672, %v656, %v688
        %v705 = vsel %vm673, %v657, %v689
        %v706 = vsel %vm674, %v658, %v690
        %v707 = vsel %vm675, %v659, %v691
        %v708 = vsel %vm676, %v660, %v692
        %v709 = vsel %vm677, %v661, %v693
        %v710 = vsel %vm678, %v662, %v694
        %v711 = vsel %vm679, %v663, %v695
        %v712 = vpack.c.bf16 %v697, %v696
        %v713 = vpack.c.bf16 %v699, %v698
        %v714 = vpack.c.bf16 %v701, %v700
        %v715 = vpack.c.bf16 %v703, %v702
        %v716 = vpack.c.bf16 %v705, %v704
        %v717 = vpack.c.bf16 %v707, %v706
        %v718 = vpack.c.bf16 %v709, %v708
        %v719 = vpack.c.bf16 %v711, %v710
        %v720 = vld [vmem:[%s5] sm:$0xf]
        %v721 = vld [vmem:[%s5 + $0x4] sm:$0xf]
        %v722 = vld [vmem:[%s5 + $0x8] sm:$0xf]
        %v723 = vld [vmem:[%s5 + $0xc] sm:$0xf]
        %v724 = vld [vmem:[%s5 + $0x10] sm:$0xf]
        %v725 = vld [vmem:[%s5 + $0x14] sm:$0xf]
        %v726 = vld [vmem:[%s5 + $0x18] sm:$0xf]
        %v727 = vld [vmem:[%s5 + $0x1c] sm:$0xf]
        %v728 = vld [vmem:[%s6] sm:$0x1]
        %v730 = vperm.slane %v728, 0
        %v740 = vunpack.c.l.b16 %v720
        %v741 = vunpack.c.l.b16 %v721
        %v742 = vunpack.c.l.b16 %v722
        %v743 = vunpack.c.l.b16 %v723
        %v744 = vunpack.c.l.b16 %v724
        %v745 = vunpack.c.l.b16 %v725
        %v746 = vunpack.c.l.b16 %v726
        %v747 = vunpack.c.l.b16 %v727
        %v748 = vpack.c.b16 %v741, %v740
        %v749 = vpack.c.b16 %v743, %v742
        %v750 = vpack.c.b16 %v745, %v744
        %v751 = vpack.c.b16 %v747, %v746
        %vm756 = vcmask 523264
        %v758 = vsel %vm756, %v712, 0
        %v761 = vsel %vm756, %v713, 0
        %v764 = vsel %vm756, %v714, 0
        %v767 = vsel %vm756, %v715, 0
        %v770 = vsel %vm756, %v716, 0
        %v773 = vsel %vm756, %v717, 0
        %v776 = vsel %vm756, %v718, 0
        %v779 = vsel %vm756, %v719, 0
        %781 = vmatpush.bf16.msra.mxu0 0
        %782 = vmatpush.bf16.msra.mxu0 0
        %783 = vmatpush.bf16.msra.mxu0 0
        %784 = vmatpush.bf16.msra.mxu0 0
        %785 = vmatpush.bf16.msra.mxu0 %v751
        %786 = vmatpush.bf16.msra.mxu0 %v750
        %787 = vmatpush.bf16.msra.mxu0 %v749
        %788 = vmatpush.bf16.msra.mxu0 %v748
        %789 = vmatmul.bf16.gmra.mxu0 %v758
        %v790 = vpop.f32.mrf.mxu0
        %v791 = vadd.f32 %v730, %v790
        %v792 = vpop.f32.mrf.mxu0
        %v793 = vadd.f32 %v730, %v792
        %794 = vmatmul.bf16.gmra.mxu0 %v761
        %v795 = vpop.f32.mrf.mxu0
        %v796 = vadd.f32 %v730, %v795
        %v797 = vpop.f32.mrf.mxu0
        %v798 = vadd.f32 %v730, %v797
        %799 = vmatmul.bf16.gmra.mxu0 %v764
        %v800 = vpop.f32.mrf.mxu0
        %v801 = vadd.f32 %v730, %v800
        %v802 = vpop.f32.mrf.mxu0
        %v803 = vadd.f32 %v730, %v802
        %804 = vmatmul.bf16.gmra.mxu0 %v767
        %v805 = vpop.f32.mrf.mxu0
        %v806 = vadd.f32 %v730, %v805
        %v807 = vpop.f32.mrf.mxu0
        %v808 = vadd.f32 %v730, %v807
        %809 = vmatmul.bf16.gmra.mxu0 %v770
        %v810 = vpop.f32.mrf.mxu0
        %v811 = vadd.f32 %v730, %v810
        %v812 = vpop.f32.mrf.mxu0
        %v813 = vadd.f32 %v730, %v812
        %814 = vmatmul.bf16.gmra.mxu0 %v773
        %v815 = vpop.f32.mrf.mxu0
        %v816 = vadd.f32 %v730, %v815
        %v817 = vpop.f32.mrf.mxu0
        %v818 = vadd.f32 %v730, %v817
        %819 = vmatmul.bf16.gmra.mxu0 %v776
        %v820 = vpop.f32.mrf.mxu0
        %v821 = vadd.f32 %v730, %v820
        %v822 = vpop.f32.mrf.mxu0
        %v823 = vadd.f32 %v730, %v822
        %824 = vmatmul.bf16.gmra.mxu0 %v779
        %v825 = vpop.f32.mrf.mxu0
        %v826 = vadd.f32 %v730, %v825
        %v827 = vpop.f32.mrf.mxu0
        %v828 = vadd.f32 %v730, %v827
        %829 = vdwg.mxu0
        %vm830 = vcmp.gt.f32.partialorder %v791, 0.0
        %vm831 = vcmp.gt.f32.partialorder %v793, 0.0
        %vm832 = vcmp.gt.f32.partialorder %v796, 0.0
        %vm833 = vcmp.gt.f32.partialorder %v798, 0.0
        %vm834 = vcmp.gt.f32.partialorder %v801, 0.0
        %vm835 = vcmp.gt.f32.partialorder %v803, 0.0
        %vm836 = vcmp.gt.f32.partialorder %v806, 0.0
        %vm837 = vcmp.gt.f32.partialorder %v808, 0.0
        %vm838 = vcmp.gt.f32.partialorder %v811, 0.0
        %vm839 = vcmp.gt.f32.partialorder %v813, 0.0
        %vm840 = vcmp.gt.f32.partialorder %v816, 0.0
        %vm841 = vcmp.gt.f32.partialorder %v818, 0.0
        %vm842 = vcmp.gt.f32.partialorder %v821, 0.0
        %vm843 = vcmp.gt.f32.partialorder %v823, 0.0
        %vm844 = vcmp.gt.f32.partialorder %v826, 0.0
        %vm845 = vcmp.gt.f32.partialorder %v828, 0.0
        %v846 = vmul.f32 %v791, 0.2
        %v847 = vmul.f32 %v793, 0.2
        %v848 = vmul.f32 %v796, 0.2
        %v849 = vmul.f32 %v798, 0.2
        %v850 = vmul.f32 %v801, 0.2
        %v851 = vmul.f32 %v803, 0.2
        %v852 = vmul.f32 %v806, 0.2
        %v853 = vmul.f32 %v808, 0.2
        %v854 = vmul.f32 %v811, 0.2
        %v855 = vmul.f32 %v813, 0.2
        %v856 = vmul.f32 %v816, 0.2
        %v857 = vmul.f32 %v818, 0.2
        %v858 = vmul.f32 %v821, 0.2
        %v859 = vmul.f32 %v823, 0.2
        %v860 = vmul.f32 %v826, 0.2
        %v861 = vmul.f32 %v828, 0.2
        %v862 = vsel %vm830, %v791, %v846
        %v863 = vsel %vm831, %v793, %v847
        %v864 = vsel %vm832, %v796, %v848
        %v865 = vsel %vm833, %v798, %v849
        %v866 = vsel %vm834, %v801, %v850
        %v867 = vsel %vm835, %v803, %v851
        %v868 = vsel %vm836, %v806, %v852
        %v869 = vsel %vm837, %v808, %v853
        %v870 = vsel %vm838, %v811, %v854
        %v871 = vsel %vm839, %v813, %v855
        %v872 = vsel %vm840, %v816, %v856
        %v873 = vsel %vm841, %v818, %v857
        %v874 = vsel %vm842, %v821, %v858
        %v875 = vsel %vm843, %v823, %v859
        %v876 = vsel %vm844, %v826, %v860
        %v877 = vsel %vm845, %v828, %v861
        %v878 = vpack.c.bf16 %v863, %v862
        %v879 = vpack.c.bf16 %v865, %v864
        %v880 = vpack.c.bf16 %v867, %v866
        %v881 = vpack.c.bf16 %v869, %v868
        %v882 = vpack.c.bf16 %v871, %v870
        %v883 = vpack.c.bf16 %v873, %v872
        %v884 = vpack.c.bf16 %v875, %v874
        %v885 = vpack.c.bf16 %v877, %v876
        %v886 = vld [vmem:[%s7] sm:$0xf]
        %v887 = vld [vmem:[%s7 + $0x4] sm:$0xf]
        %v888 = vld [vmem:[%s7 + $0x8] sm:$0xf]
        %v889 = vld [vmem:[%s7 + $0xc] sm:$0xf]
        %v890 = vld [vmem:[%s8] sm:$0x1]
        %v892 = vperm.slane %v890, 0
        %v898 = vunpack.c.l.b16 %v886
        %v899 = vunpack.c.l.b16 %v887
        %v900 = vunpack.c.l.b16 %v888
        %v901 = vunpack.c.l.b16 %v889
        %v902 = vpack.c.b16 %v899, %v898
        %v903 = vpack.c.b16 %v901, %v900
        %v907 = vsel %vm570, %v878, 0
        %v910 = vsel %vm570, %v879, 0
        %v913 = vsel %vm570, %v880, 0
        %v916 = vsel %vm570, %v881, 0
        %v919 = vsel %vm570, %v882, 0
        %v922 = vsel %vm570, %v883, 0
        %v925 = vsel %vm570, %v884, 0
        %v928 = vsel %vm570, %v885, 0
        %930 = vmatpush.bf16.msra.mxu0 0
        %931 = vmatpush.bf16.msra.mxu0 0
        %932 = vmatpush.bf16.msra.mxu0 0
        %933 = vmatpush.bf16.msra.mxu0 0
        %934 = vmatpush.bf16.msra.mxu0 0
        %935 = vmatpush.bf16.msra.mxu0 0
        %936 = vmatpush.bf16.msra.mxu0 %v903
        %937 = vmatpush.bf16.msra.mxu0 %v902
        %938 = vmatmul.bf16.gmra.mxu0 %v907
        %v939 = vpop.f32.mrf.mxu0
        %v940 = vadd.f32 %v892, %v939
        %v941 = vpop.f32.mrf.mxu0
        %v942 = vadd.f32 %v892, %v941
        %943 = vmatmul.bf16.gmra.mxu0 %v910
        %v944 = vpop.f32.mrf.mxu0
        %v945 = vadd.f32 %v892, %v944
        %v946 = vpop.f32.mrf.mxu0
        %v947 = vadd.f32 %v892, %v946
        %948 = vmatmul.bf16.gmra.mxu0 %v913
        %v949 = vpop.f32.mrf.mxu0
        %v950 = vadd.f32 %v892, %v949
        %v951 = vpop.f32.mrf.mxu0
        %v952 = vadd.f32 %v892, %v951
        %953 = vmatmul.bf16.gmra.mxu0 %v916
        %v954 = vpop.f32.mrf.mxu0
        %v955 = vadd.f32 %v892, %v954
        %v956 = vpop.f32.mrf.mxu0
        %v957 = vadd.f32 %v892, %v956
        %958 = vmatmul.bf16.gmra.mxu0 %v919
        %v959 = vpop.f32.mrf.mxu0
        %v960 = vadd.f32 %v892, %v959
        %v961 = vpop.f32.mrf.mxu0
        %v962 = vadd.f32 %v892, %v961
        %963 = vmatmul.bf16.gmra.mxu0 %v922
        %v964 = vpop.f32.mrf.mxu0
        %v965 = vadd.f32 %v892, %v964
        %v966 = vpop.f32.mrf.mxu0
        %v967 = vadd.f32 %v892, %v966
        %968 = vmatmul.bf16.gmra.mxu0 %v925
        %v969 = vpop.f32.mrf.mxu0
        %v970 = vadd.f32 %v892, %v969
        %v971 = vpop.f32.mrf.mxu0
        %v972 = vadd.f32 %v892, %v971
        %973 = vmatmul.bf16.gmra.mxu0 %v928
        %v974 = vpop.f32.mrf.mxu0
        %v975 = vadd.f32 %v892, %v974
        %v976 = vpop.f32.mrf.mxu0
        %v977 = vadd.f32 %v892, %v976
        %978 = vdwg.mxu0
        %vm979 = vcmp.gt.f32.partialorder %v940, 0.0
        %vm980 = vcmp.gt.f32.partialorder %v942, 0.0
        %vm981 = vcmp.gt.f32.partialorder %v945, 0.0
        %vm982 = vcmp.gt.f32.partialorder %v947, 0.0
        %vm983 = vcmp.gt.f32.partialorder %v950, 0.0
        %vm984 = vcmp.gt.f32.partialorder %v952, 0.0
        %vm985 = vcmp.gt.f32.partialorder %v955, 0.0
        %vm986 = vcmp.gt.f32.partialorder %v957, 0.0
        %vm987 = vcmp.gt.f32.partialorder %v960, 0.0
        %vm988 = vcmp.gt.f32.partialorder %v962, 0.0
        %vm989 = vcmp.gt.f32.partialorder %v965, 0.0
        %vm990 = vcmp.gt.f32.partialorder %v967, 0.0
        %vm991 = vcmp.gt.f32.partialorder %v970, 0.0
        %vm992 = vcmp.gt.f32.partialorder %v972, 0.0
        %vm993 = vcmp.gt.f32.partialorder %v975, 0.0
        %vm994 = vcmp.gt.f32.partialorder %v977, 0.0
        %v995 = vmul.f32 %v940, 0.2
        %v996 = vmul.f32 %v942, 0.2
        %v997 = vmul.f32 %v945, 0.2
        %v998 = vmul.f32 %v947, 0.2
        %v999 = vmul.f32 %v950, 0.2
        %v1000 = vmul.f32 %v952, 0.2
        %v1001 = vmul.f32 %v955, 0.2
        %v1002 = vmul.f32 %v957, 0.2
        %v1003 = vmul.f32 %v960, 0.2
        %v1004 = vmul.f32 %v962, 0.2
        %v1005 = vmul.f32 %v965, 0.2
        %v1006 = vmul.f32 %v967, 0.2
        %v1007 = vmul.f32 %v970, 0.2
        %v1008 = vmul.f32 %v972, 0.2
        %v1009 = vmul.f32 %v975, 0.2
        %v1010 = vmul.f32 %v977, 0.2
        %v1011 = vsel %vm979, %v940, %v995
        %v1012 = vsel %vm980, %v942, %v996
        %v1013 = vsel %vm981, %v945, %v997
        %v1014 = vsel %vm982, %v947, %v998
        %v1015 = vsel %vm983, %v950, %v999
        %v1016 = vsel %vm984, %v952, %v1000
        %v1017 = vsel %vm985, %v955, %v1001
        %v1018 = vsel %vm986, %v957, %v1002
        %v1019 = vsel %vm987, %v960, %v1003
        %v1020 = vsel %vm988, %v962, %v1004
        %v1021 = vsel %vm989, %v965, %v1005
        %v1022 = vsel %vm990, %v967, %v1006
        %v1023 = vsel %vm991, %v970, %v1007
        %v1024 = vsel %vm992, %v972, %v1008
        %v1025 = vsel %vm993, %v975, %v1009
        %v1026 = vsel %vm994, %v977, %v1010
        %1027 = vst [vmem:[%s342] sm:$0xff] %v1011
        %1028 = vst [vmem:[%s342 + $0x8] sm:$0xff] %v1012
        %1029 = vst [vmem:[%s342 + $0x10] sm:$0xff] %v1013
        %1030 = vst [vmem:[%s342 + $0x18] sm:$0xff] %v1014
        %1031 = vst [vmem:[%s342 + $0x20] sm:$0xff] %v1015
        %1032 = vst [vmem:[%s342 + $0x28] sm:$0xff] %v1016
        %1033 = vst [vmem:[%s342 + $0x30] sm:$0xff] %v1017
        %1034 = vst [vmem:[%s342 + $0x38] sm:$0xff] %v1018
        %1035 = vst [vmem:[%s342 + $0x40] sm:$0xff] %v1019
        %1036 = vst [vmem:[%s342 + $0x48] sm:$0xff] %v1020
        %1037 = vst [vmem:[%s342 + $0x50] sm:$0xff] %v1021
        %1038 = vst [vmem:[%s342 + $0x58] sm:$0xff] %v1022
        %1039 = vst [vmem:[%s342 + $0x60] sm:$0xff] %v1023
        %1040 = vst [vmem:[%s342 + $0x68] sm:$0xff] %v1024
        %1041 = vst [vmem:[%s342 + $0x70] sm:$0xff] %v1025
        %1042 = vst [vmem:[%s342 + $0x78] sm:$0xff] %v1026
        %s1043 = sand.u32 %s230, 1
        %s1044 = scalar_lea.sflag [#allocation3], %s1043
        %s1045 = sand.u32 %s230, 1
        %s1046 = smul.addr %s1045, 128
        %s1047 = scalar_lea.vmem [#allocation2], %s1046
        // Predicated region
        $region57: #{tpu_custom_call.1} parent=55 // pred_check
          %p1048 = pneg %p240
        $region58: #{tpu_custom_call.1} parent=55 // pred_check_branch
          %1050 = sbr.rel (%p1048) target = $region60
        $region59: #{tpu_custom_call.1} parent=55 // pred_region
          %s1051 = smul.u32 16, %s23
          %1053 = vsyncadd %s1044, 0
          %s1054 = smul.addr %s1051, 8
          %s1055 = scalar_lea.hbm %s9, %s1054
          %s1056 = sshll.u32 %s1047, 4
          %s1057 = int_to_ptr.vmem [resolvable:$true] %s1056
          %s1058 = sshll.u32 %s1055, 4
          %s1059 = int_to_ptr.hbm [resolvable:$true] %s1058
          %1064 = dma.vmem_to_hbm [thread:$0]  %s1057, 2048, %s1059, %s1044, 128, 128, 8
        $region60: #{tpu_custom_call.1} parent=55 // pred_fallthru
          _
      $region56: #{tpu_custom_call.1} parent=5 // pred_fallthru
        _
      %p1065 = scmp.le.s32.totalorder 2, %s18
      // Predicated region
      $region61: #{tpu_custom_call.1} parent=5 // pred_check
        %p1066 = pneg %p1065
      $region62: #{tpu_custom_call.1} parent=5 // pred_check_branch
        %1068 = sbr.rel (%p1066) target = $region64
      $region63: #{tpu_custom_call.1} parent=5 // pred_region
        %s1069 = ssub.s32 %s18, 2
        // Predicated region
        $region65: #{tpu_custom_call.1} parent=63 // pred_check
          %p1070 = pneg %p246
        $region66: #{tpu_custom_call.1} parent=63 // pred_check_branch
          %1072 = sbr.rel (%p1070) target = $region68
        $region67: #{tpu_custom_call.1} parent=63 // pred_region
          %s1073 = sand.u32 %s231, 1
          %s1074 = scalar_lea.sflag [#allocation3], %s1073
          %s1075 = sand.u32 %s231, 1
          %s1076 = smul.addr %s1075, 128
          %s1077 = scalar_lea.vmem [#allocation2], %s1076
          %1079 = dma.done %s1074, 2048
        $region68: #{tpu_custom_call.1} parent=63 // pred_fallthru
          _
      $region64: #{tpu_custom_call.1} parent=5 // pred_fallthru
        _
    $region6: #{tpu_custom_call.1} parent=1 // loop_footer
      %s22 = sadd.s32 1, %s18
    $region7: #{tpu_custom_call.1} parent=1 // loop_footer_branch
      %17 = sbr.rel target = $region3
    $region8: #{tpu_custom_call.1} parent=1 // loop_exit
      _
    %1080 = vsyncpa [#allocation3], 1
    %s1081 = scalar_lea.sflag [#allocation3], 1
    %1082 = vsyncpa %s1081, 1

</llo_original>
